<compile_context>
chip_gen: v5e
topology: v5e:2x2
jax: 0.10.0
libtpu: 0.0.40
codegen_flags: <defaults>
</compile_context>

<pallas_src>
import functools

import jax
import jax.numpy as jnp
from jax.experimental import pallas as pl
from jax.experimental.pallas import tpu as pltpu


def _round_up(x: int, m: int) -> int:
    return ((x + m - 1) // m) * m


def _make_linear_kernel(compute_dtype):
    def linear_kernel(x_ref, w_ref, b_ref, o_ref):
        """One (tm, tn) output tile; reduction over the K grid axis.

        x_ref: (tm, tk)  activation tile
        w_ref: (tk, tn)  pre-transposed weight tile (K, N layout)
        b_ref: (1, tn)   lane-dense bias tile
        o_ref: (tm, tn)  f32 output tile, resident across K (accumulated in place)
        """
        k = pl.program_id(2)

        @pl.when(k == 0)
        def _():
            # Fold the bias into the accumulator init.
            o_ref[...] = jnp.broadcast_to(
                b_ref[...].astype(o_ref.dtype), o_ref.shape
            )

        x = x_ref[...]
        w = w_ref[...]
        if compute_dtype is not None:
            # Optional reduced-precision MXU inputs (f32 accumulate).
            x = x.astype(compute_dtype)
            w = w.astype(compute_dtype)

        o_ref[...] += jnp.dot(x, w, preferred_element_type=jnp.float32)

    return linear_kernel


def make_net_forward(weight, bias, *, tm=512, tn=512, tk=1024,
                     compute_dtype=None):
    """Builds the forward fn for Net: y = x @ weight.T + bias.

    weight: (out_features, in_features)  (PyTorch nn.Linear convention)
    bias:   (out_features,)

    Parameter padding / transposition happens once here (amortized across all
    forward calls); only the activation is padded per call when misaligned.
    """
    out_f, in_f = weight.shape
    assert bias.shape == (out_f,)

    # Lane-aligned padded parameter sizes.
    n_pad = _round_up(out_f, 128)
    k_pad = _round_up(in_f, 128)

    # Clamp tiles to the padded problem, preserving (8, 128) alignment.
    tn = min(tn, n_pad)
    tk = min(tk, k_pad)
    n_pad = _round_up(n_pad, tn)
    k_pad = _round_up(k_pad, tk)

    # One-time parameter relayout: (out, in) -> zero-padded (K, N) and (1, N).
    # Zero-padded K rows contribute 0 to the dot; padded N cols are sliced off.
    w_kn = jnp.pad(weight, ((0, n_pad - out_f), (0, k_pad - in_f))).T
    w_kn = jnp.asarray(w_kn)                      # (k_pad, n_pad)
    b_p = jnp.pad(bias, (0, n_pad - out_f)).reshape(1, n_pad)

    kernel = _make_linear_kernel(compute_dtype)

    def forward(x):
        B, in_f_x = x.shape
        assert in_f_x == in_f
        assert x.dtype == jnp.float32  # in-place o_ref accumulation assumes f32 out

        m_pad = _round_up(B, 8)
        # Single M block when the batch fits: each weight block is DMA'd once.
        if m_pad <= tm:
            tm_local = m_pad
        else:
            tm_local = tm
            m_pad = _round_up(m_pad, tm_local)

        # v7x megacore: make sure the combined parallel extent is >= 2 when the
        # problem allows it (split N into two j blocks).
        tn_local = tn
        if (m_pad // tm_local == 1 and n_pad // tn_local == 1
                and n_pad >= 256 and (n_pad // 2) % 128 == 0):
            tn_local = n_pad // 2

        x_p = x
        if (m_pad, k_pad) != (B, in_f):
            x_p = jnp.pad(x, ((0, m_pad - B), (0, k_pad - in_f)))

        grid = (m_pad // tm_local, n_pad // tn_local, k_pad // tk)

        out_padded = pl.pallas_call(
            kernel,
            out_shape=jax.ShapeDtypeStruct((m_pad, n_pad), jnp.float32),
            grid_spec=pltpu.PrefetchScalarGridSpec(
                num_scalar_prefetch=0,
                grid=grid,
                in_specs=[
                    pl.BlockSpec((tm_local, tk), lambda i, j, k: (i, k)),   # x
                    pl.BlockSpec((tk, tn_local), lambda i, j, k: (k, j)),   # W (K,N)
                    pl.BlockSpec((1, tn_local), lambda i, j, k: (0, j)),    # bias
                ],
                out_specs=pl.BlockSpec(
                    (tm_local, tn_local), lambda i, j, k: (i, j)),
            ),
            compiler_params=pltpu.CompilerParams(
                dimension_semantics=("parallel", "parallel", "arbitrary"),
                vmem_limit_bytes=32 << 20,
            ),
        )(x_p, w_kn, b_p)

        return out_padded[:B, :out_f]

    return forward


def net_forward(x, weight, bias, **kwargs):
    """One-shot convenience wrapper (prepares params and runs forward once)."""
    return make_net_forward(weight, bias, **kwargs)(x)


if __name__ == "__main__":
    # Small shapes consistent with the module: Net(input_features=32, output_features=16)
    batch = 8
    input_features = 32
    output_features = 16

    key = jax.random.PRNGKey(0)
    kx, kw, kb = jax.random.split(key, 3)

    x = jax.random.normal(kx, (batch, input_features), dtype=jnp.float32)
    # PyTorch-shaped parameters: (out_features, in_features) and (out_features,)
    weight = jax.random.normal(
        kw, (output_features, input_features), dtype=jnp.float32) * 0.1
    bias = jax.random.normal(kb, (output_features,), dtype=jnp.float32) * 0.1

    forward = make_net_forward(weight, bias)   # params padded/transposed once
    y = forward(x)
    y = jax.block_until_ready(y)

    # Reference check against plain JAX (same semantics as nn.Linear).
    y_ref = x @ weight.T + bias
    assert y.shape == (batch, output_features)
    assert jnp.allclose(y, y_ref, atol=1e-5, rtol=1e-5)

    print("KERNEL_OK")
</pallas_src>

<mosaic_0001>
module attributes {stable_mosaic.version = 11 : i64} {
  func.func @linear_kernel(%arg0: i32, %arg1: i32, %arg2: i32, %arg3: memref<8x128xf32, #tpu.memory_space<vmem>>, %arg4: memref<128x128xf32, #tpu.memory_space<vmem>>, %arg5: memref<1x128xf32, #tpu.memory_space<vmem>>, %arg6: memref<8x128xf32, #tpu.memory_space<vmem>>) attributes {dimension_semantics = [#tpu.dimension_semantics<parallel>, #tpu.dimension_semantics<parallel>, #tpu.dimension_semantics<arbitrary>], iteration_bounds = array<i64: 1, 1, 1>, scalar_prefetch = 0 : i64, scratch_operands = 0 : i64, tpu.core_type = #tpu.core_type<tc>, window_params = [{transform_indices = @transform_0, window_bounds = array<i64: 8, 128>}, {transform_indices = @transform_1, window_bounds = array<i64: 128, 128>}, {transform_indices = @transform_2, window_bounds = array<i64: 1, 128>}, {transform_indices = @transform_3, window_bounds = array<i64: 8, 128>}]} {
    %c0_i32 = arith.constant 0 : i32
    %0 = arith.cmpi eq, %arg2, %c0_i32 : i32
    %1 = arith.extui %0 : i1 to i32
    %c0_i32_0 = arith.constant 0 : i32
    %2 = arith.cmpi ne, %1, %c0_i32_0 : i32
    scf.if %2 {
      %c0_8 = arith.constant 0 : index
      %c0_9 = arith.constant 0 : index
      %9 = vector.load %arg5[%c0_8, %c0_9] : memref<1x128xf32, #tpu.memory_space<vmem>>, vector<1x128xf32>
      %10 = vector.shape_cast %9 : vector<1x128xf32> to vector<1x128xf32>
      %11 = vector.broadcast %10 : vector<1x128xf32> to vector<8x128xf32>
      %c0_10 = arith.constant 0 : index
      %c0_11 = arith.constant 0 : index
      %12 = vector.load %arg6[%c0_10, %c0_11] : memref<8x128xf32, #tpu.memory_space<vmem>>, vector<8x128xf32>
      tpu.vector_store %arg6[%c0_10, %c0_11], %11 {strides = array<i32>} : memref<8x128xf32, #tpu.memory_space<vmem>>, vector<8x128xf32>,
    } else {
    }
    %c0 = arith.constant 0 : index
    %c0_1 = arith.constant 0 : index
    %3 = vector.load %arg3[%c0, %c0_1] : memref<8x128xf32, #tpu.memory_space<vmem>>, vector<8x128xf32>
    %c0_2 = arith.constant 0 : index
    %c0_3 = arith.constant 0 : index
    %4 = vector.load %arg4[%c0_2, %c0_3] : memref<128x128xf32, #tpu.memory_space<vmem>>, vector<128x128xf32>
    %c0_4 = arith.constant 0 : index
    %c0_5 = arith.constant 0 : index
    %5 = vector.load %arg6[%c0_4, %c0_5] : memref<8x128xf32, #tpu.memory_space<vmem>>, vector<8x128xf32>
    %cst = arith.constant dense<0.000000e+00> : vector<8x128xf32>
    %6 = tpu.matmul %3, %4, %cst {dimension_numbers = #tpu.dot_dimension_numbers<[1], [0], [0], [1], [0, 0, 1, 1], [], []>} : vector<8x128xf32>, vector<128x128xf32>, vector<8x128xf32> -> vector<8x128xf32>
    %7 = arith.addf %5, %6 : vector<8x128xf32>
    %c0_6 = arith.constant 0 : index
    %c0_7 = arith.constant 0 : index
    %8 = vector.load %arg6[%c0_6, %c0_7] : memref<8x128xf32, #tpu.memory_space<vmem>>, vector<8x128xf32>
    tpu.vector_store %arg6[%c0_6, %c0_7], %7 {strides = array<i32>} : memref<8x128xf32, #tpu.memory_space<vmem>>, vector<8x128xf32>,
    return
  }
  func.func @transform_0(%arg0: i32, %arg1: i32, %arg2: i32) -> (i32, i32) {
    %c0_i32 = arith.constant 0 : i32
    return %arg0, %arg2 : i32, i32
  }
  func.func @transform_1(%arg0: i32, %arg1: i32, %arg2: i32) -> (i32, i32) {
    %c0_i32 = arith.constant 0 : i32
    return %arg2, %arg1 : i32, i32
  }
  func.func @transform_2(%arg0: i32, %arg1: i32, %arg2: i32) -> (i32, i32) {
    %c0_i32 = arith.constant 0 : i32
    %c0_i32_0 = arith.constant 0 : i32
    return %c0_i32, %arg1 : i32, i32
  }
  func.func @transform_3(%arg0: i32, %arg1: i32, %arg2: i32) -> (i32, i32) {
    %c0_i32 = arith.constant 0 : i32
    return %arg0, %arg1 : i32, i32
  }
}

</mosaic_0001>

<llo_original>
// kernel: tpu_custom_call.1
$region0: #{tpu_custom_call.1}
  #allocation0 [shape = 'u32[]', space=smem, size = 0x4, offset = 0x4, fixed_abs, tag = 'smem constant byte address 0x4 - core index']
  #allocation1 [shape = 'u32[72,128]{1,0:T(1,128)}', space=vmem, size = 0x9000, scoped, tag = 'internal scratch']
  %s0 = inlined_call_operand.hbm [shape: f32[8,128], index: 0, kind: input, shape index: {}]
  %s1 = inlined_call_operand.hbm [shape: f32[128,128], index: 1, kind: input, shape index: {}]
  %s2 = inlined_call_operand.vmem [shape: f32[1,128], index: 2, kind: input, shape index: {}]
  %s3 = inlined_call_operand.hbm [shape: f32[8,128], index: 3, kind: output, shape index: {}]
  %s4 = sld [smem:[#allocation0]]
  $region34: #{tpu_custom_call.1} parent=0
    _
  %s6 = ssub.s32 1, %s4
  %s7 = scalar_select 0, %s6, %s4
  $region1: #{tpu_custom_call.1} parent=0
    #allocation2 [shape = 'u8[4096]{0}', space=vmem, size = 0x1000, scoped, tag = 'input window, operand 0, single buffered']
    #allocation3 [shape = 's32[1]{0}', space=sflag, size = 0x4, scoped, tag = 'scoped memory for tpu_custom_call.1']
    #allocation4 [shape = 's32[1]{0}', space=sflag, size = 0x4, scoped, tag = 'scoped memory for tpu_custom_call.1']
    #allocation5 [shape = 'u8[65536]{0}', space=vmem, size = 0x10000, scoped, tag = 'input window, operand 1, single buffered']
    #allocation6 [shape = 's32[1]{0}', space=sflag, size = 0x4, scoped, tag = 'scoped memory for tpu_custom_call.1']
    #allocation7 [shape = 'u8[4096]{0}', space=vmem, size = 0x1000, scoped, tag = 'output window, operand 0, single buffered']
    %8 = vsyncpa [#allocation3], 0
    %9 = vsyncpa [#allocation6], 0
    %10 = vsyncpa [#allocation4], 0
    // Predicated region
    $region2: #{tpu_custom_call.1} parent=1 // pred_check
      _
    $region3: #{tpu_custom_call.1} parent=1 // pred_check_branch
      %12 = sbr.rel (0) target = $region5
    $region4: #{tpu_custom_call.1} parent=1 // pred_region
      %14 = vsyncadd [#allocation3], 0
      %s16 = sshll.u32 %s0, 4
      %s17 = int_to_ptr.hbm [resolvable:$true] %s16
      %s18 = sshll.u32 [#allocation2], 4
      %s19 = int_to_ptr.vmem [resolvable:$true] %s18
      %21 = dma.hbm_to_vmem [thread:$0]  %s17, 128, %s19, [#allocation3]
    $region5: #{tpu_custom_call.1} parent=1 // pred_fallthru
      _
    // Predicated region
    $region6: #{tpu_custom_call.1} parent=1 // pred_check
      _
    $region7: #{tpu_custom_call.1} parent=1 // pred_check_branch
      %23 = sbr.rel (0) target = $region9
    $region8: #{tpu_custom_call.1} parent=1 // pred_region
      %25 = vsyncadd [#allocation6], 0
      %s26 = sshll.u32 %s1, 4
      %s27 = int_to_ptr.hbm [resolvable:$true] %s26
      %s28 = sshll.u32 [#allocation5], 4
      %s29 = int_to_ptr.vmem [resolvable:$true] %s28
      %34 = dma.hbm_to_vmem [thread:$0]  %s27, 2048, %s29, [#allocation6], 128, 128, 8
    $region9: #{tpu_custom_call.1} parent=1 // pred_fallthru
      _
    // Predicated region
    $region10: #{tpu_custom_call.1} parent=1 // pred_check
      _
    $region11: #{tpu_custom_call.1} parent=1 // pred_check_branch
      %36 = sbr.rel (0) target = $region13
    $region12: #{tpu_custom_call.1} parent=1 // pred_region
      _
    $region13: #{tpu_custom_call.1} parent=1 // pred_fallthru
      _
    // Predicated region
    $region14: #{tpu_custom_call.1} parent=1 // pred_check
      _
    $region15: #{tpu_custom_call.1} parent=1 // pred_check_branch
      %38 = sbr.rel (0) target = $region17
    $region16: #{tpu_custom_call.1} parent=1 // pred_region
      %40 = dma.done [#allocation3], 128
    $region17: #{tpu_custom_call.1} parent=1 // pred_fallthru
      _
    // Predicated region
    $region18: #{tpu_custom_call.1} parent=1 // pred_check
      _
    $region19: #{tpu_custom_call.1} parent=1 // pred_check_branch
      %42 = sbr.rel (0) target = $region21
    $region20: #{tpu_custom_call.1} parent=1 // pred_region
      %44 = dma.done [#allocation6], 2048
    $region21: #{tpu_custom_call.1} parent=1 // pred_fallthru
      _
    %p45 = scmp.eq.s32.totalorder 0, 0
    // Predicated region
    $region22: #{tpu_custom_call.1} parent=1 // pred_check
      %p46 = pneg %p45
    $region23: #{tpu_custom_call.1} parent=1 // pred_check_branch
      %48 = sbr.rel (%p46) target = $region25
    $region24: #{tpu_custom_call.1} parent=1 // pred_region
      %v49 = vld [vmem:[%s2] sm:$0x1]
      %v51 = vperm.slane %v49, 0
      %53 = vst [vmem:[#allocation7] sm:$0xff] %v51
    $region25: #{tpu_custom_call.1} parent=1 // pred_fallthru
      _
    %v54 = vld [vmem:[#allocation2] sm:$0xff]
    %v55 = vld [vmem:[#allocation5] sm:$0xff]
    %v56 = vld [vmem:[#allocation5 + $0x8] sm:$0xff]
    %v57 = vld [vmem:[#allocation5 + $0x10] sm:$0xff]
    %v58 = vld [vmem:[#allocation5 + $0x18] sm:$0xff]
    %v59 = vld [vmem:[#allocation5 + $0x20] sm:$0xff]
    %v60 = vld [vmem:[#allocation5 + $0x28] sm:$0xff]
    %v61 = vld [vmem:[#allocation5 + $0x30] sm:$0xff]
    %v62 = vld [vmem:[#allocation5 + $0x38] sm:$0xff]
    %v63 = vld [vmem:[#allocation5 + $0x40] sm:$0xff]
    %v64 = vld [vmem:[#allocation5 + $0x48] sm:$0xff]
    %v65 = vld [vmem:[#allocation5 + $0x50] sm:$0xff]
    %v66 = vld [vmem:[#allocation5 + $0x58] sm:$0xff]
    %v67 = vld [vmem:[#allocation5 + $0x60] sm:$0xff]
    %v68 = vld [vmem:[#allocation5 + $0x68] sm:$0xff]
    %v69 = vld [vmem:[#allocation5 + $0x70] sm:$0xff]
    %v70 = vld [vmem:[#allocation5 + $0x78] sm:$0xff]
    %v71 = vld [vmem:[#allocation7] sm:$0xff]
    %72 = vmatpush.msra.mxu0 %v70
    %73 = vmatpush.msra.mxu0 %v69
    %74 = vmatpush.msra.mxu0 %v68
    %75 = vmatpush.msra.mxu0 %v67
    %76 = vmatpush.msra.mxu0 %v66
    %77 = vmatpush.msra.mxu0 %v65
    %78 = vmatpush.msra.mxu0 %v64
    %79 = vmatpush.msra.mxu0 %v63
    %80 = vmatpush.msra.mxu0 %v62
    %81 = vmatpush.msra.mxu0 %v61
    %82 = vmatpush.msra.mxu0 %v60
    %83 = vmatpush.msra.mxu0 %v59
    %84 = vmatpush.msra.mxu0 %v58
    %85 = vmatpush.msra.mxu0 %v57
    %86 = vmatpush.msra.mxu0 %v56
    %87 = vmatpush.msra.mxu0 %v55
    %88 = vmatmul.f32.gmra.mxu0 %v54
    %v89 = vpop.f32.mrf.mxu0
    %v90 = vadd.f32 0.0, %v89
    %91 = vdwg.mxu0
    %v92 = vadd.f32 %v71, %v90
    %93 = vst [vmem:[#allocation7] sm:$0xff] %v92
    // Predicated region
    $region26: #{tpu_custom_call.1} parent=1 // pred_check
      _
    $region27: #{tpu_custom_call.1} parent=1 // pred_check_branch
      %95 = sbr.rel (0) target = $region29
    $region28: #{tpu_custom_call.1} parent=1 // pred_region
      %97 = vsyncadd [#allocation4], 0
      %s99 = sshll.u32 [#allocation7], 4
      %s100 = int_to_ptr.vmem [resolvable:$true] %s99
      %s101 = sshll.u32 %s3, 4
      %s102 = int_to_ptr.hbm [resolvable:$true] %s101
      %104 = dma.vmem_to_hbm [thread:$0]  %s100, 128, %s102, [#allocation4]
    $region29: #{tpu_custom_call.1} parent=1 // pred_fallthru
      _
    // Predicated region
    $region30: #{tpu_custom_call.1} parent=1 // pred_check
      _
    $region31: #{tpu_custom_call.1} parent=1 // pred_check_branch
      %106 = sbr.rel (0) target = $region33
    $region32: #{tpu_custom_call.1} parent=1 // pred_region
      %108 = dma.done [#allocation4], 128
    $region33: #{tpu_custom_call.1} parent=1 // pred_fallthru
      _
    %109 = vsyncpa [#allocation3], 1
    %110 = vsyncpa [#allocation6], 1
    %111 = vsyncpa [#allocation4], 1

</llo_original>
